<compile_context>
chip_gen: v7x
topology: tpu7x:2x2x1
jax: 0.10.0
libtpu: 0.0.40
codegen_flags: <defaults>
</compile_context>

<pallas_src>
import jax
import jax.numpy as jnp
from jax.experimental import pallas as pl
from jax.experimental.pallas import tpu as pltpu


def _waveblock_kernel(scale_ref, x_ref, o_ref):
    # scale_ref: (1, block_cols); broadcasts over the row dim of the x tile.
    o_ref[...] = x_ref[...] * scale_ref[...]


def _sublane_granularity(dtype) -> int:
    # Packed sublane granularity: 8 rows/vreg for 32-bit, 16 for 16-bit,
    # 32 for 8-bit dtypes.
    return max(8, 32 // jnp.dtype(dtype).itemsize)


def _choose_fold(rows, cols, itemsize, max_row_bytes):
    """Smallest divisor g of rows with (g*cols) % 128 == 0 and a bounded row size."""
    if cols % 128 == 0:
        return 1
    for g in range(2, rows + 1):
        if rows % g:
            continue
        if (g * cols) % 128 == 0 and g * cols * itemsize <= max_row_bytes:
            return g
    return 1  # fall back to masked tail stores (correct, just slower)


def waveblock(x, sx, rh, training=True, *,
              target_block_bytes=6 * 1024 * 1024,
              vmem_limit_bytes=48 * 1024 * 1024,
              alias_input=False):
    """JAX/Pallas equivalent of Waveblock.forward.

    Args:
      x: (N, C, H, W) array.
      sx: starting row of the un-attenuated band (Python int or traced scalar).
      rh: band height = round(0.3 * H) (Python int or traced scalar).
      training: static Python bool; if False, returns x unchanged.
      target_block_bytes: approximate per-operand VMEM tile size.
      vmem_limit_bytes: scoped VMEM limit passed to Mosaic.
      alias_input: set True only when the caller donates x (saves the output
        HBM allocation; does not change streamed bytes).
    """
    if not training:
        return x

    N, C, H, W = x.shape
    dtype = x.dtype
    itemsize = jnp.dtype(dtype).itemsize
    rows, cols = N * C, H * W
    sub = _sublane_granularity(dtype)

    # Optionally fold g channels per flattened row to make cols lane-dense.
    g = _choose_fold(rows, cols, itemsize, target_block_bytes)
    rows_f, cols_f = rows // g, cols * g
    x2 = x.reshape(rows_f, cols_f)  # free view for contiguous NCHW

    # Per-column scale row over the folded columns: column c maps to image
    # row (c % (H*W)) // W.  1.0 inside the band, 1.5 outside.
    col_idx = jnp.arange(cols_f, dtype=jnp.int32)
    h_idx = (col_idx % cols) // W
    in_band = (h_idx >= sx) & (h_idx < sx + rh)
    scale = jnp.where(in_band, 1.0, 1.5).astype(dtype).reshape(1, cols_f)

    # ---- Tiling decision -------------------------------------------------
    row_bytes = cols_f * itemsize
    rows_per_target = target_block_bytes // max(row_bytes, 1)

    if rows_per_target >= rows_f:
        # Whole array fits in one target-sized block.
        block_rows, block_cols = rows_f, cols_f
    elif rows_per_target >= sub:
        # Row tiling with full-width (lane-dense) columns.
        block_rows = min(rows_f, (rows_per_target // sub) * sub)
        block_cols = cols_f
    else:
        # Few rows / huge columns: tile columns in multiples of 128 so a
        # single block never exceeds the VMEM budget (fatal on v7x otherwise).
        block_rows = min(rows_f, sub)
        cols_per_target = target_block_bytes // max(block_rows * itemsize, 1)
        block_cols = min(cols_f, max(128, (cols_per_target // 128) * 128))

    grid = (pl.cdiv(rows_f, block_rows), pl.cdiv(cols_f, block_cols))

    out2 = pl.pallas_call(
        _waveblock_kernel,
        out_shape=jax.ShapeDtypeStruct((rows_f, cols_f), dtype),
        grid_spec=pl.GridSpec(
            grid=grid,
            in_specs=[
                pl.BlockSpec((1, block_cols), lambda i, j: (0, j)),          # scale
                pl.BlockSpec((block_rows, block_cols), lambda i, j: (i, j)),  # x
            ],
            out_specs=pl.BlockSpec((block_rows, block_cols), lambda i, j: (i, j)),
        ),
        compiler_params=pltpu.CompilerParams(
            dimension_semantics=("parallel", "parallel"),
            vmem_limit_bytes=vmem_limit_bytes,
        ),
        input_output_aliases=({1: 0} if alias_input else {}),
    )(scale, x2)
    return out2.reshape(N, C, H, W)


if __name__ == "__main__":
    key = jax.random.PRNGKey(0)
    kx, ks = jax.random.split(key)

    N, C, H, W = 2, 4, 16, 16
    x = jax.random.normal(kx, (N, C, H, W), dtype=jnp.float32)

    # Waveblock has no learned parameters; its only state is the random band.
    # Reproduce: rh = round(0.3 * h); sx = random.randint(0, h - rh) (inclusive).
    # TODO(synk): Python's `random.randint` host RNG has no in-kernel analog;
    # the band position is drawn here in the wrapper/test instead.
    rh = int(round(0.3 * H))
    sx = int(jax.random.randint(ks, (), 0, H - rh + 1))

    out = waveblock(x, sx, rh, training=True)
    out = jax.block_until_ready(out)

    # Pure-JAX reference check.
    mask = jnp.full((N, C, H, W), 1.5, dtype=x.dtype)
    mask = mask.at[:, :, sx:sx + rh, :].set(1.0)
    ref = x * mask
    assert jnp.allclose(out, ref), "mismatch vs reference"

    # Eval mode is the identity.
    assert jnp.array_equal(waveblock(x, sx, rh, training=False), x)

    print("KERNEL_OK")
</pallas_src>

<mosaic_0001>
module attributes {stable_mosaic.version = 11 : i64} {
  func.func @_waveblock_kernel(%arg0: i32, %arg1: i32, %arg2: memref<1x256xf32, #tpu.memory_space<vmem>>, %arg3: memref<8x256xf32, #tpu.memory_space<vmem>>, %arg4: memref<8x256xf32, #tpu.memory_space<vmem>>) attributes {dimension_semantics = [#tpu.dimension_semantics<parallel>, #tpu.dimension_semantics<parallel>], iteration_bounds = array<i64: 1, 1>, scalar_prefetch = 0 : i64, scratch_operands = 0 : i64, tpu.core_type = #tpu.core_type<tc>, window_params = [{transform_indices = @transform_0, window_bounds = array<i64: 1, 256>}, {transform_indices = @transform_1, window_bounds = array<i64: 8, 256>}, {transform_indices = @transform_2, window_bounds = array<i64: 8, 256>}]} {
    %c0 = arith.constant 0 : index
    %c0_0 = arith.constant 0 : index
    %0 = vector.load %arg3[%c0, %c0_0] : memref<8x256xf32, #tpu.memory_space<vmem>>, vector<8x256xf32>
    %c0_1 = arith.constant 0 : index
    %c0_2 = arith.constant 0 : index
    %1 = vector.load %arg2[%c0_1, %c0_2] : memref<1x256xf32, #tpu.memory_space<vmem>>, vector<1x256xf32>
    %2 = vector.broadcast %1 : vector<1x256xf32> to vector<8x256xf32>
    %3 = arith.mulf %0, %2 : vector<8x256xf32>
    %c0_3 = arith.constant 0 : index
    %c0_4 = arith.constant 0 : index
    %4 = vector.load %arg4[%c0_3, %c0_4] : memref<8x256xf32, #tpu.memory_space<vmem>>, vector<8x256xf32>
    tpu.vector_store %arg4[%c0_3, %c0_4], %3 {strides = array<i32>} : memref<8x256xf32, #tpu.memory_space<vmem>>, vector<8x256xf32>,
    return
  }
  func.func @transform_0(%arg0: i32, %arg1: i32) -> (i32, i32) {
    %c0_i32 = arith.constant 0 : i32
    %c0_i32_0 = arith.constant 0 : i32
    return %c0_i32, %arg1 : i32, i32
  }
  func.func @transform_1(%arg0: i32, %arg1: i32) -> (i32, i32) {
    %c0_i32 = arith.constant 0 : i32
    return %arg0, %arg1 : i32, i32
  }
  func.func @transform_2(%arg0: i32, %arg1: i32) -> (i32, i32) {
    %c0_i32 = arith.constant 0 : i32
    return %arg0, %arg1 : i32, i32
  }
}

</mosaic_0001>

<llo_original>
// kernel: tpu_custom_call.1
$region0: #{tpu_custom_call.1}
  #allocation0 [shape = 'u32[]', space=smem, size = 0x4, offset = 0x4, fixed_abs, tag = 'smem constant byte address 0x4 - core index']
  #allocation1 [shape = 'u32[144,128]{1,0:T(1,128)}', space=vmem, size = 0x12000, scoped, tag = 'internal scratch']
  %s0 = inlined_call_operand.hbm [shape: f32[1,256], index: 0, kind: input, shape index: {}]
  %s1 = inlined_call_operand.hbm [shape: f32[8,256], index: 1, kind: input, shape index: {}]
  %s2 = inlined_call_operand.hbm [shape: f32[8,256], index: 2, kind: output, shape index: {}]
  %s3 = sld [smem:[#allocation0]]
  $region26: #{tpu_custom_call.1} parent=0
    _
  %s5 = ssub.s32 1, %s3
  %s6 = scalar_select 0, %s5, %s3
  $region1: #{tpu_custom_call.1} parent=0
    #allocation2 [shape = 'u8[1024]{0}', space=vmem, size = 0x400, scoped, tag = 'input window, operand 0, single buffered']
    #allocation3 [shape = 's32[1]{0}', space=sflag, size = 0x4, scoped, tag = 'scoped memory for tpu_custom_call.1']
    #allocation4 [shape = 's32[1]{0}', space=sflag, size = 0x4, scoped, tag = 'scoped memory for tpu_custom_call.1']
    #allocation5 [shape = 'u8[8192]{0}', space=vmem, size = 0x2000, scoped, tag = 'input window, operand 1, single buffered']
    #allocation6 [shape = 's32[1]{0}', space=sflag, size = 0x4, scoped, tag = 'scoped memory for tpu_custom_call.1']
    #allocation7 [shape = 'u8[8192]{0}', space=vmem, size = 0x2000, scoped, tag = 'output window, operand 0, single buffered']
    %7 = vsyncpa [#allocation3], 0
    %8 = vsyncpa [#allocation6], 0
    %9 = vsyncpa [#allocation4], 0
    // Predicated region
    $region2: #{tpu_custom_call.1} parent=1 // pred_check
      _
    $region3: #{tpu_custom_call.1} parent=1 // pred_check_branch
      %11 = sbr.rel (0) target = $region5
    $region4: #{tpu_custom_call.1} parent=1 // pred_region
      %s13 = ssub.s32 32, 32
      %14 = vsyncadd [#allocation3], %s13
      %s16 = sshll.u32 [#allocation2], 4
      %s17 = int_to_ptr.vmem [resolvable:$true] %s16
      %19 = dma.hbm_to_vmem [thread:$0]  %s0, 32, %s17, [#allocation3]
    $region5: #{tpu_custom_call.1} parent=1 // pred_fallthru
      _
    // Predicated region
    $region6: #{tpu_custom_call.1} parent=1 // pred_check
      _
    $region7: #{tpu_custom_call.1} parent=1 // pred_check_branch
      %21 = sbr.rel (0) target = $region9
    $region8: #{tpu_custom_call.1} parent=1 // pred_region
      %s23 = ssub.s32 256, 256
      %24 = vsyncadd [#allocation6], %s23
      %s26 = sshll.u32 [#allocation5], 4
      %s27 = int_to_ptr.vmem [resolvable:$true] %s26
      %29 = dma.hbm_to_vmem [thread:$0]  %s1, 256, %s27, [#allocation6]
    $region9: #{tpu_custom_call.1} parent=1 // pred_fallthru
      _
    // Predicated region
    $region10: #{tpu_custom_call.1} parent=1 // pred_check
      _
    $region11: #{tpu_custom_call.1} parent=1 // pred_check_branch
      %31 = sbr.rel (0) target = $region13
    $region12: #{tpu_custom_call.1} parent=1 // pred_region
      %32 = dma.done [#allocation3], 32
    $region13: #{tpu_custom_call.1} parent=1 // pred_fallthru
      _
    // Predicated region
    $region14: #{tpu_custom_call.1} parent=1 // pred_check
      _
    $region15: #{tpu_custom_call.1} parent=1 // pred_check_branch
      %34 = sbr.rel (0) target = $region17
    $region16: #{tpu_custom_call.1} parent=1 // pred_region
      %35 = dma.done [#allocation6], 256
    $region17: #{tpu_custom_call.1} parent=1 // pred_fallthru
      _
    %v36 = vld [vmem:[#allocation5] sm:$0xff]
    %v37 = vld [vmem:[#allocation5 + $0x8] sm:$0xff]
    %v38 = vld [vmem:[#allocation2] sm:$0x3]
    %v40 = vlaneseq
    %v41 = vshrl.u32 %v40, 7
    %v42 = vsub.s32 0, %v41
    %v43 = vrot.slane %v38, %v42
    %v44 = vlaneseq
    %v45 = vshrl.u32 %v44, 7
    %v46 = vsub.s32 1, %v45
    %v47 = vrot.slane %v38, %v46
    %v50 = vmul.f32 %v36, %v43
    %v51 = vmul.f32 %v37, %v47
    %52 = vst [vmem:[#allocation7] sm:$0xff] %v50
    %53 = vst [vmem:[#allocation7 + $0x8] sm:$0xff] %v51
    // Predicated region
    $region18: #{tpu_custom_call.1} parent=1 // pred_check
      _
    $region19: #{tpu_custom_call.1} parent=1 // pred_check_branch
      %55 = sbr.rel (0) target = $region21
    $region20: #{tpu_custom_call.1} parent=1 // pred_region
      %s57 = ssub.s32 256, 256
      %58 = vsyncadd [#allocation4], %s57
      %s60 = sshll.u32 [#allocation7], 4
      %s61 = int_to_ptr.vmem [resolvable:$true] %s60
      %63 = dma.vmem_to_hbm [thread:$0]  %s61, 256, %s2, [#allocation4]
    $region21: #{tpu_custom_call.1} parent=1 // pred_fallthru
      _
    // Predicated region
    $region22: #{tpu_custom_call.1} parent=1 // pred_check
      _
    $region23: #{tpu_custom_call.1} parent=1 // pred_check_branch
      %65 = sbr.rel (0) target = $region25
    $region24: #{tpu_custom_call.1} parent=1 // pred_region
      %66 = dma.done [#allocation4], 256
    $region25: #{tpu_custom_call.1} parent=1 // pred_fallthru
      _
    %67 = vsyncpa [#allocation3], 1
    %68 = vsyncpa [#allocation6], 1
    %69 = vsyncpa [#allocation4], 1

</llo_original>
